<compile_context>
chip_gen: v7x
topology: tpu7x:2x2x1
jax: 0.10.0
libtpu: 0.0.40
codegen_flags: <defaults>
</compile_context>

<pallas_src>
import jax
import jax.numpy as jnp
from jax.experimental import pallas as pl
from jax.experimental.pallas import tpu as pltpu


def conv3x3_tanh_kernel(x_ref, w_ref, b_ref, o_ref):
    # x_ref: (H, W*Cin)        bf16   (one image; N squeezed out by the BlockSpec)
    # w_ref: (KH, W*Cin, OW*Cout) bf16 banded weights
    # b_ref: (1, OW*Cout)      f32    bias tiled over OW
    # o_ref: (OH, OW*Cout)     f32
    KH = w_ref.shape[0]
    OH = o_ref.shape[0]

    acc = jnp.zeros(o_ref.shape, jnp.float32)
    # 3 deep matmuls (K = W*Cin = 256) instead of 9 shallow K=16 taps; the kw
    # shift lives inside the banded weight, so we only slice along H (offset-0
    # slice for kh=0, tiny sublane-offset slices for kh=1,2).
    for kh in range(KH):
        acc += jnp.dot(x_ref[kh:kh + OH, :], w_ref[kh],
                       preferred_element_type=jnp.float32)

    acc = acc + b_ref[...]               # f32 bias add (broadcast over rows)
    o_ref[...] = jnp.tanh(acc).astype(o_ref.dtype)   # f32 tanh on the EUP


def _pack_banded_weights(w_hwio, W, OW):
    """wb[kh, i*Cin+ci, ow*Cout+co] = w[kh, i-ow, ci, co] if 0 <= i-ow < KW else 0."""
    KH, KW, Cin, Cout = w_hwio.shape
    i_idx = jnp.arange(W)[:, None]            # input column
    ow_idx = jnp.arange(OW)[None, :]          # output column
    kw_idx = i_idx - ow_idx                   # (W, OW)
    valid = (kw_idx >= 0) & (kw_idx < KW)
    blocks = w_hwio[:, jnp.clip(kw_idx, 0, KW - 1)]      # (KH, W, OW, Cin, Cout)
    blocks = jnp.where(valid[None, :, :, None, None], blocks, 0.0)
    wb = blocks.transpose(0, 1, 3, 2, 4).reshape(KH, W * Cin, OW * Cout)
    return wb


def conv_tanh_nhwc(x_nhwc, w_hwio, bias):
    """Fused Conv2d(3x3, valid) + tanh, NHWC in / NHWC out, Pallas TPU kernel."""
    N, H, W, Cin = x_nhwc.shape
    KH, KW, _, Cout = w_hwio.shape
    OH, OW = H - KH + 1, W - KW + 1
    WC, OWC = W * Cin, OW * Cout

    # bf16 MXU inputs, f32 accumulate / bias / tanh.
    x_fused = x_nhwc.reshape(N, H, WC).astype(jnp.bfloat16)
    w_band = _pack_banded_weights(w_hwio, W, OW).astype(jnp.bfloat16)
    b_fused = jnp.tile(bias.astype(jnp.float32), OW).reshape(1, OWC)

    flops = 2 * N * OH * OW * KH * KW * Cin * Cout
    bytes_accessed = (x_fused.size * 2 + w_band.size * 2
                      + b_fused.size * 4 + N * OH * OWC * 4)

    out = pl.pallas_call(
        conv3x3_tanh_kernel,
        out_shape=jax.ShapeDtypeStruct((N, OH, OWC), jnp.float32),
        grid=(N,),
        in_specs=[
            pl.BlockSpec((None, H, WC), lambda n: (n, 0, 0)),     # per-image activation
            pl.BlockSpec((KH, WC, OWC), lambda n: (0, 0, 0)),     # full banded weights
            pl.BlockSpec((1, OWC), lambda n: (0, 0)),             # tiled bias
        ],
        out_specs=pl.BlockSpec((None, OH, OWC), lambda n: (n, 0, 0)),
        compiler_params=pltpu.CompilerParams(
            dimension_semantics=("parallel",)),
        cost_estimate=pl.CostEstimate(
            flops=flops,
            transcendentals=N * OH * OW * Cout,
            bytes_accessed=bytes_accessed),
    )(x_fused, w_band, b_fused)

    return out.reshape(N, OH, OW, Cout)


@jax.jit
def conv_tanh_nchw(x_nchw, weight_oihw, bias):
    """PyTorch-layout convenience wrapper (layout plumbing only)."""
    x_nhwc = jnp.transpose(x_nchw, (0, 2, 3, 1))        # NCHW -> NHWC
    w_hwio = jnp.transpose(weight_oihw, (2, 3, 1, 0))   # OIHW -> HWIO
    y_nhwc = conv_tanh_nhwc(x_nhwc, w_hwio, bias)
    return jnp.transpose(y_nhwc, (0, 3, 1, 2))          # NHWC -> NCHW


if __name__ == "__main__":
    key = jax.random.PRNGKey(0)
    kx, kw, kb = jax.random.split(key, 3)

    # Conv2d(16, 16, [3, 3]) parameters, PyTorch-style uniform init.
    Cin, Cout, KH, KW = 16, 16, 3, 3
    fan_in = Cin * KH * KW
    bound = 1.0 / (fan_in ** 0.5)
    weight = jax.random.uniform(kw, (Cout, Cin, KH, KW),
                                minval=-bound, maxval=bound,
                                dtype=jnp.float32)                 # OIHW
    bias = jax.random.uniform(kb, (Cout,),
                              minval=-bound, maxval=bound,
                              dtype=jnp.float32)

    # NOTE: the literal x in the source file is (1,16,1,1), which is too small
    # for a 3x3 valid conv; use a small valid NCHW shape instead.
    x = jax.random.normal(kx, (2, 16, 16, 16), dtype=jnp.float32)

    y = conv_tanh_nchw(x, weight, bias)
    y = jax.block_until_ready(y)
    assert y.shape == (2, 16, 14, 14), y.shape

    # Reference 1: same bf16 inputs, f32 accumulation (tight check of the
    # banded-weight formulation and the kernel itself).
    ref_bf16 = jnp.tanh(
        jax.lax.conv_general_dilated(
            x.astype(jnp.bfloat16), weight.astype(jnp.bfloat16),
            window_strides=(1, 1), padding="VALID",
            dimension_numbers=("NCHW", "OIHW", "NCHW"),
            preferred_element_type=jnp.float32)
        + bias.reshape(1, Cout, 1, 1))
    err_bf16 = float(jnp.max(jnp.abs(y - ref_bf16)))
    assert jnp.allclose(y, ref_bf16, atol=2e-3, rtol=2e-3), err_bf16

    # Reference 2: full f32 conv + tanh (loose check of module semantics;
    # difference is only the intentional bf16 cast of the MXU inputs).
    ref_f32 = jnp.tanh(
        jax.lax.conv_general_dilated(
            x, weight, window_strides=(1, 1), padding="VALID",
            dimension_numbers=("NCHW", "OIHW", "NCHW"))
        + bias.reshape(1, Cout, 1, 1))
    err_f32 = float(jnp.max(jnp.abs(y - ref_f32)))
    assert jnp.allclose(y, ref_f32, atol=5e-2, rtol=5e-2), err_f32

    print("KERNEL_OK")
</pallas_src>

<mosaic_0001>
module attributes {stable_mosaic.version = 11 : i64} {
  func.func @conv3x3_tanh_kernel(%arg0: i32, %arg1: memref<1x16x256xbf16, #tpu.memory_space<vmem>>, %arg2: memref<3x256x224xbf16, #tpu.memory_space<vmem>>, %arg3: memref<1x224xf32, #tpu.memory_space<vmem>>, %arg4: memref<1x14x224xf32, #tpu.memory_space<vmem>>) attributes {dimension_semantics = [#tpu.dimension_semantics<parallel>], iteration_bounds = array<i64: 2>, scalar_prefetch = 0 : i64, scratch_operands = 0 : i64, tpu.core_type = #tpu.core_type<tc>, window_params = [{transform_indices = @transform_0, window_bounds = array<i64: 1, 16, 256>}, {pipeline_mode = #tpu.pipeline_mode<synchronous>, transform_indices = @transform_1, window_bounds = array<i64: 3, 256, 224>}, {pipeline_mode = #tpu.pipeline_mode<synchronous>, transform_indices = @transform_2, window_bounds = array<i64: 1, 224>}, {transform_indices = @transform_3, window_bounds = array<i64: 1, 14, 224>}]} {
    %cst = arith.constant 0.000000e+00 : f32
    %0 = vector.broadcast %cst : f32 to vector<14x224xf32>
    %c0 = arith.constant 0 : index
    %c0_0 = arith.constant 0 : index
    %c0_1 = arith.constant 0 : index
    %1 = vector.load %arg1[%c0, %c0_0, %c0_1] : memref<1x16x256xbf16, #tpu.memory_space<vmem>>, vector<1x14x256xbf16>
    %2 = vector.shape_cast %1 : vector<1x14x256xbf16> to vector<14x256xbf16>
    %c0_2 = arith.constant 0 : index
    %c0_3 = arith.constant 0 : index
    %c0_4 = arith.constant 0 : index
    %3 = vector.load %arg2[%c0_2, %c0_3, %c0_4] : memref<3x256x224xbf16, #tpu.memory_space<vmem>>, vector<1x256x224xbf16>
    %4 = vector.shape_cast %3 : vector<1x256x224xbf16> to vector<256x224xbf16>
    %cst_5 = arith.constant dense<0.000000e+00> : vector<14x224xf32>
    %5 = tpu.matmul %2, %4, %cst_5 {dimension_numbers = #tpu.dot_dimension_numbers<[1], [0], [0], [1], [0, 0, 1, 1], [], []>} : vector<14x256xbf16>, vector<256x224xbf16>, vector<14x224xf32> -> vector<14x224xf32>
    %6 = arith.addf %0, %5 : vector<14x224xf32>
    %c0_6 = arith.constant 0 : index
    %c1 = arith.constant 1 : index
    %c0_7 = arith.constant 0 : index
    %7 = vector.load %arg1[%c0_6, %c1, %c0_7] : memref<1x16x256xbf16, #tpu.memory_space<vmem>>, vector<1x14x256xbf16>
    %8 = vector.shape_cast %7 : vector<1x14x256xbf16> to vector<14x256xbf16>
    %c1_8 = arith.constant 1 : index
    %c0_9 = arith.constant 0 : index
    %c0_10 = arith.constant 0 : index
    %9 = vector.load %arg2[%c1_8, %c0_9, %c0_10] : memref<3x256x224xbf16, #tpu.memory_space<vmem>>, vector<1x256x224xbf16>
    %10 = vector.shape_cast %9 : vector<1x256x224xbf16> to vector<256x224xbf16>
    %cst_11 = arith.constant dense<0.000000e+00> : vector<14x224xf32>
    %11 = tpu.matmul %8, %10, %cst_11 {dimension_numbers = #tpu.dot_dimension_numbers<[1], [0], [0], [1], [0, 0, 1, 1], [], []>} : vector<14x256xbf16>, vector<256x224xbf16>, vector<14x224xf32> -> vector<14x224xf32>
    %12 = arith.addf %6, %11 : vector<14x224xf32>
    %c0_12 = arith.constant 0 : index
    %c2 = arith.constant 2 : index
    %c0_13 = arith.constant 0 : index
    %13 = vector.load %arg1[%c0_12, %c2, %c0_13] : memref<1x16x256xbf16, #tpu.memory_space<vmem>>, vector<1x14x256xbf16>
    %14 = vector.shape_cast %13 : vector<1x14x256xbf16> to vector<14x256xbf16>
    %c2_14 = arith.constant 2 : index
    %c0_15 = arith.constant 0 : index
    %c0_16 = arith.constant 0 : index
    %15 = vector.load %arg2[%c2_14, %c0_15, %c0_16] : memref<3x256x224xbf16, #tpu.memory_space<vmem>>, vector<1x256x224xbf16>
    %16 = vector.shape_cast %15 : vector<1x256x224xbf16> to vector<256x224xbf16>
    %cst_17 = arith.constant dense<0.000000e+00> : vector<14x224xf32>
    %17 = tpu.matmul %14, %16, %cst_17 {dimension_numbers = #tpu.dot_dimension_numbers<[1], [0], [0], [1], [0, 0, 1, 1], [], []>} : vector<14x256xbf16>, vector<256x224xbf16>, vector<14x224xf32> -> vector<14x224xf32>
    %18 = arith.addf %12, %17 : vector<14x224xf32>
    %c0_18 = arith.constant 0 : index
    %c0_19 = arith.constant 0 : index
    %19 = vector.load %arg3[%c0_18, %c0_19] : memref<1x224xf32, #tpu.memory_space<vmem>>, vector<1x224xf32>
    %20 = vector.broadcast %19 : vector<1x224xf32> to vector<14x224xf32>
    %21 = arith.addf %18, %20 : vector<14x224xf32>
    %22 = math.tanh %21 : vector<14x224xf32>
    %c0_20 = arith.constant 0 : index
    %c0_21 = arith.constant 0 : index
    %c0_22 = arith.constant 0 : index
    %23 = vector.load %arg4[%c0_20, %c0_21, %c0_22] : memref<1x14x224xf32, #tpu.memory_space<vmem>>, vector<1x14x224xf32>
    %24 = vector.shape_cast %23 : vector<1x14x224xf32> to vector<14x224xf32>
    %25 = vector.shape_cast %22 : vector<14x224xf32> to vector<1x14x224xf32>
    tpu.vector_store %arg4[%c0_20, %c0_21, %c0_22], %25 {strides = array<i32>} : memref<1x14x224xf32, #tpu.memory_space<vmem>>, vector<1x14x224xf32>,
    return
  }
  func.func @transform_0(%arg0: i32) -> (i32, i32, i32) {
    %c0_i32 = arith.constant 0 : i32
    %c0_i32_0 = arith.constant 0 : i32
    %c0_i32_1 = arith.constant 0 : i32
    return %arg0, %c0_i32, %c0_i32_0 : i32, i32, i32
  }
  func.func @transform_1(%arg0: i32) -> (i32, i32, i32) {
    %c0_i32 = arith.constant 0 : i32
    %c0_i32_0 = arith.constant 0 : i32
    %c0_i32_1 = arith.constant 0 : i32
    %c0_i32_2 = arith.constant 0 : i32
    return %c0_i32, %c0_i32_0, %c0_i32_1 : i32, i32, i32
  }
  func.func @transform_2(%arg0: i32) -> (i32, i32) {
    %c0_i32 = arith.constant 0 : i32
    %c0_i32_0 = arith.constant 0 : i32
    %c0_i32_1 = arith.constant 0 : i32
    return %c0_i32, %c0_i32_0 : i32, i32
  }
  func.func @transform_3(%arg0: i32) -> (i32, i32, i32) {
    %c0_i32 = arith.constant 0 : i32
    %c0_i32_0 = arith.constant 0 : i32
    %c0_i32_1 = arith.constant 0 : i32
    return %arg0, %c0_i32, %c0_i32_0 : i32, i32, i32
  }
}

</mosaic_0001>

<llo_original>
// kernel: tile.8
$region0: #{tile.8}
  #allocation0 [shape = 's32[1]{0}', space=sflag, size = 0x4, scoped, tag = 'scoped memory for tile.8']
  %s0 = inlined_call_operand.vmem [shape: f32[16], index: 0, kind: input, shape index: {}]
  %s1 = inlined_call_operand.vmem [shape: f32[14,16], index: 1, kind: output, shape index: {}]
  // Predicated region
  $region2: #{tile.8} parent=0 // pred_check
    _
  $region3: #{tile.8} parent=0 // pred_check_branch
    %3 = sbr.rel (0) target = $region5
  $region4: #{tile.8} parent=0 // pred_region
    _
  $region5: #{tile.8} parent=0 // pred_fallthru
    _
  %v4 = vld [vmem:[%s0] ss:$0 sm:$0xff]
  %5 = vst [vmem:[%s1] sm:$0xff] %v4
  %s6 = scalar_lea.vmem %s1, 8
  %7 = vst [vmem:[%s6] sm:$0xff] %v4

// kernel: tile.9
$region0: #{tile.9}
  %s0 = inlined_call_operand.vmem [shape: f32[14,16], index: 0, kind: input, shape index: {}]
  %s1 = inlined_call_operand.vmem [shape: f32[1,224], index: 1, kind: output, shape index: {}]
  $region1: #{tile.9} parent=0
    #allocation0 [shape = 'u8[8192]{0}', space=vmem, size = 0x2000, scoped, tag = 'scoped mem for output reshape']
    %s2 = smov 3
    %v3 = vld [vmem:[%s0] ss:$8 sm:%s2]
    %vm4 = vcmask 130048
    %5 = vst.msk [vmem:[#allocation0] ss:$8 sm:$0x3] %vm4, %v3
    %s6 = scalar_lea.vmem %s0, 7
    %v7 = vld [vmem:[%s6] sm:$0x1]
    %8 = vrot.lane.b32.xlu0 %v7, 112
    %v9 = vpop.permute.xlu0 %8
    %vm10 = vcmask 1048448
    %11 = vst.msk [vmem:[#allocation0] sm:$0x1] %vm10, %v9
    %s12 = scalar_lea.vmem %s0, 6
    %v13 = vld [vmem:[%s12] sm:$0x1]
    %14 = vrot.lane.b32.xlu0 %v13, 96
    %v15 = vpop.permute.xlu0 %14
    %vm16 = vcmask 917248
    %17 = vst.msk [vmem:[#allocation0] sm:$0x1] %vm16, %v15
    %s18 = scalar_lea.vmem %s0, 5
    %s19 = smov 3
    %v20 = vld [vmem:[%s18] ss:$8 sm:%s19]
    %21 = vrot.lane.b32.xlu0 %v20, 80
    %v22 = vpop.permute.xlu0 %21
    %vm23 = vcmask 786048
    %24 = vst.msk [vmem:[#allocation0] ss:$8 sm:$0x3] %vm23, %v22
    %s25 = scalar_lea.vmem %s0, 4
    %s26 = smov 3
    %v27 = vld [vmem:[%s25] ss:$8 sm:%s26]
    %28 = vrot.lane.b32.xlu0 %v27, 64
    %v29 = vpop.permute.xlu0 %28
    %vm30 = vcmask 654848
    %31 = vst.msk [vmem:[#allocation0] ss:$8 sm:$0x3] %vm30, %v29
    %s32 = scalar_lea.vmem %s0, 3
    %s33 = smov 3
    %v34 = vld [vmem:[%s32] ss:$8 sm:%s33]
    %35 = vrot.lane.b32.xlu0 %v34, 48
    %v36 = vpop.permute.xlu0 %35
    %vm37 = vcmask 523648
    %38 = vst.msk [vmem:[#allocation0] ss:$8 sm:$0x3] %vm37, %v36
    %s39 = scalar_lea.vmem %s0, 2
    %s40 = smov 3
    %v41 = vld [vmem:[%s39] ss:$8 sm:%s40]
    %42 = vrot.lane.b32.xlu0 %v41, 32
    %v43 = vpop.permute.xlu0 %42
    %vm44 = vcmask 392448
    %45 = vst.msk [vmem:[#allocation0] ss:$8 sm:$0x3] %vm44, %v43
    %s46 = scalar_lea.vmem %s0, 1
    %s47 = smov 3
    %v48 = vld [vmem:[%s46] ss:$8 sm:%s47]
    %49 = vrot.lane.b32.xlu0 %v48, 16
    %v50 = vpop.permute.xlu0 %49
    %vm51 = vcmask 261248
    %52 = vst.msk [vmem:[#allocation0] ss:$8 sm:$0x3] %vm51, %v50
    %s54 = sshllo.u32 0, 1
    %v56 = vld [vmem:[#allocation0] sm:%s54]
    %s57 = sshllo.u32 0, 1
    %58 = vst [vmem:[%s1] sm:%s57] %v56
    %s59 = scalar_lea.vmem [#allocation0], 8
    %v60 = vld [vmem:[%s59] sm:%s54]
    %s61 = sshllo.u32 0, 1
    %s62 = scalar_lea.vmem %s1, 1
    %63 = vst [vmem:[%s62] sm:%s61] %v60

// kernel: conv_tanh_nchw.1
$region0: #{conv_tanh_nchw.1}
  #allocation0 [shape = 'u32[]', space=smem, size = 0x4, offset = 0x4, fixed_abs, tag = 'smem constant byte address 0x4 - core index']
  #allocation1 [shape = 'u32[144,128]{1,0:T(1,128)}', space=vmem, size = 0x12000, scoped, tag = 'internal scratch']
  %s0 = inlined_call_operand.vmem [shape: bf16[2,16,256], index: 0, kind: input, shape index: {}]
  %s1 = inlined_call_operand.vmem [shape: bf16[3,256,224], index: 1, kind: input, shape index: {}]
  %s2 = inlined_call_operand.vmem [shape: f32[1,224], index: 2, kind: input, shape index: {}]
  %s3 = inlined_call_operand.vmem [shape: f32[2,14,224], index: 3, kind: output, shape index: {}]
  %s4 = sld [smem:[#allocation0]]
  $region45: #{conv_tanh_nchw.1} parent=0
    _
  %s6 = ssub.s32 1, %s4
  %s7 = scalar_select 0, %s6, %s4
  loop: start=0, step=1, limit=4
  $region2: #{conv_tanh_nchw.1} parent=0 // loop_pre_header
    _
  $region3: #{conv_tanh_nchw.1} parent=0 // loop_header
    %s9 = sphi 0, %s13
    %p10 = scmp.ge.s32.totalorder %s9, 4
    %s19 = sphi 0, %s21
    %s22 = sphi 0, %s19
    %s23 = sphi 0, %s22
    %s39 = sphi 0, %s23
    %s43 = sphi 0, %s43
    %s45 = sphi 0, %s43
    %s46 = sphi 0, %s45
    %s60 = sphi 0, %s46
    %s64 = sphi 0, %s64
    %s66 = sphi 0, %s64
    %s67 = sphi 0, %s66
    %s81 = sphi 0, %s67
    %s87 = sphi 0, %s89
    %s90 = sphi 0, %s87
    %s91 = sphi 0, %s90
    %s107 = sphi 0, %s91
  $region4: #{conv_tanh_nchw.1} parent=0 // loop_header_branch
    %12 = sbr.rel (%p10) target = $region8
  $region5: #{conv_tanh_nchw.1} parent=0 // loop_body
    %s14 = ssub.s32 %s9, 1
    %s15 = ssub.s32 %s9, 2
    %s16 = sadd.s32 %s9, 1
    %s17 = ssub.s32 %s9, %s16
    %p18 = scmp.eq.s32.totalorder %s17, 0
    %s20 = sadd.s32 %s19, 1
    %s21 = scalar_select %p18, %s19, %s20
    %p24 = pneg %p18
    %p25 = scmp.eq.s32.totalorder %s9, 1
    %p26 = por %p24, %p25
    %p27 = scmp.ne.s32.totalorder %s19, %s22
    %p28 = scmp.eq.s32.totalorder %s9, 0
    %p29 = por %p27, %p28
    %p30 = scmp.ne.s32.totalorder %s19, %s22
    %p31 = scmp.eq.s32.totalorder %s14, 1
    %p32 = por %p30, %p31
    %p33 = scmp.ne.s32.totalorder %s22, %s23
    %p34 = scmp.eq.s32.totalorder %s14, 0
    %p35 = por %p33, %p34
    %p36 = scmp.ne.s32.totalorder %s22, %s23
    %p37 = scmp.eq.s32.totalorder %s15, 1
    %p38 = por %p36, %p37
    %p40 = scmp.ne.s32.totalorder %s23, %s39
    %p41 = scmp.eq.s32.totalorder %s15, 0
    %p42 = por %p40, %p41
    %s44 = sadd.s32 %s43, 1
    %p47 = scmp.eq.s32.totalorder %s9, 1
    %p48 = scmp.ne.s32.totalorder %s43, %s45
    %p49 = scmp.eq.s32.totalorder %s9, 0
    %p50 = por %p48, %p49
    %p51 = scmp.ne.s32.totalorder %s43, %s45
    %p52 = scmp.eq.s32.totalorder %s14, 1
    %p53 = por %p51, %p52
    %p54 = scmp.ne.s32.totalorder %s45, %s46
    %p55 = scmp.eq.s32.totalorder %s14, 0
    %p56 = por %p54, %p55
    %p57 = scmp.ne.s32.totalorder %s45, %s46
    %p58 = scmp.eq.s32.totalorder %s15, 1
    %p59 = por %p57, %p58
    %p61 = scmp.ne.s32.totalorder %s46, %s60
    %p62 = scmp.eq.s32.totalorder %s15, 0
    %p63 = por %p61, %p62
    %s65 = sadd.s32 %s64, 1
    %p68 = scmp.eq.s32.totalorder %s9, 1
    %p69 = scmp.ne.s32.totalorder %s64, %s66
    %p70 = scmp.eq.s32.totalorder %s9, 0
    %p71 = por %p69, %p70
    %p72 = scmp.ne.s32.totalorder %s64, %s66
    %p73 = scmp.eq.s32.totalorder %s14, 1
    %p74 = por %p72, %p73
    %p75 = scmp.ne.s32.totalorder %s66, %s67
    %p76 = scmp.eq.s32.totalorder %s14, 0
    %p77 = por %p75, %p76
    %p78 = scmp.ne.s32.totalorder %s66, %s67
    %p79 = scmp.eq.s32.totalorder %s15, 1
    %p80 = por %p78, %p79
    %p82 = scmp.ne.s32.totalorder %s67, %s81
    %p83 = scmp.eq.s32.totalorder %s15, 0
    %p84 = por %p82, %p83
    %s85 = ssub.s32 %s9, %s16
    %p86 = scmp.eq.s32.totalorder %s85, 0
    %s88 = sadd.s32 %s87, 1
    %s89 = scalar_select %p86, %s87, %s88
    %p92 = pneg %p86
    %p93 = scmp.eq.s32.totalorder %s9, 1
    %p94 = por %p92, %p93
    %p95 = scmp.ne.s32.totalorder %s87, %s90
    %p96 = scmp.eq.s32.totalorder %s9, 0
    %p97 = por %p95, %p96
    %p98 = scmp.ne.s32.totalorder %s87, %s90
    %p99 = scmp.eq.s32.totalorder %s14, 1
    %p100 = por %p98, %p99
    %p101 = scmp.ne.s32.totalorder %s90, %s91
    %p102 = scmp.eq.s32.totalorder %s14, 0
    %p103 = por %p101, %p102
    %p104 = scmp.ne.s32.totalorder %s90, %s91
    %p105 = scmp.eq.s32.totalorder %s15, 1
    %p106 = por %p104, %p105
    %p108 = scmp.ne.s32.totalorder %s91, %s107
    %p109 = scmp.eq.s32.totalorder %s15, 0
    %p110 = por %p108, %p109
    %p111 = scmp.le.s32.totalorder 1, %s9
    %p112 = scmp.lt.s32.totalorder %s9, 3
    %p113 = pnand %p111, %p112
    %p114 = pneg %p113
    // Predicated region
    $region9: #{conv_tanh_nchw.1} parent=5 // pred_check
      _
    $region10: #{conv_tanh_nchw.1} parent=5 // pred_check_branch
      %116 = sbr.rel (%p113) target = $region12
    $region11: #{conv_tanh_nchw.1} parent=5 // pred_region
      %s117 = ssub.s32 %s9, 1
      // Predicated region
      $region13: #{conv_tanh_nchw.1} parent=11 // pred_check
        %p118 = pneg %p56
      $region14: #{conv_tanh_nchw.1} parent=11 // pred_check_branch
        %120 = sbr.rel (%p118) target = $region16
      $region15: #{conv_tanh_nchw.1} parent=11 // pred_region
        _
      $region16: #{conv_tanh_nchw.1} parent=11 // pred_fallthru
        _
      // Predicated region
      $region17: #{conv_tanh_nchw.1} parent=11 // pred_check
        %p121 = pneg %p77
      $region18: #{conv_tanh_nchw.1} parent=11 // pred_check_branch
        %123 = sbr.rel (%p121) target = $region20
      $region19: #{conv_tanh_nchw.1} parent=11 // pred_region
        _
      $region20: #{conv_tanh_nchw.1} parent=11 // pred_fallthru
        _
    $region12: #{conv_tanh_nchw.1} parent=5 // pred_fallthru
      _
    %p124 = scmp.lt.s32.totalorder %s9, 2
    // Predicated region
    $region21: #{conv_tanh_nchw.1} parent=5 // pred_check
      %p125 = pneg %p124
    $region22: #{conv_tanh_nchw.1} parent=5 // pred_check_branch
      %127 = sbr.rel (%p125) target = $region24
    $region23: #{conv_tanh_nchw.1} parent=5 // pred_region
      // Predicated region
      $region25: #{conv_tanh_nchw.1} parent=23 // pred_check
        %p128 = pneg %p29
      $region26: #{conv_tanh_nchw.1} parent=23 // pred_check_branch
        %130 = sbr.rel (%p128) target = $region28
      $region27: #{conv_tanh_nchw.1} parent=23 // pred_region
        %p131 = scmp.lt.s32.totalorder %s9, 1
        %s132 = scalar_select %p131, %s9, 1
        %s133 = smul.addr %s132, 4
        %s134 = smul.addr %s133, 4
        %s135 = scalar_lea.vmem %s0, %s134
      $region28: #{conv_tanh_nchw.1} parent=23 // pred_fallthru
        _
    $region24: #{conv_tanh_nchw.1} parent=5 // pred_fallthru
      _
    %p136 = scmp.le.s32.totalorder 1, %s9
    %p137 = scmp.lt.s32.totalorder %s9, 3
    %p138 = pnand %p136, %p137
    %p139 = pneg %p138
    // Predicated region
    $region29: #{conv_tanh_nchw.1} parent=5 // pred_check
      _
    $region30: #{conv_tanh_nchw.1} parent=5 // pred_check_branch
      %141 = sbr.rel (%p138) target = $region32
    $region31: #{conv_tanh_nchw.1} parent=5 // pred_region
      %s142 = ssub.s32 %s9, 1
      %p143 = scmp.lt.s32.totalorder %s14, 1
      %s144 = scalar_select %p143, %s14, 1
      %s145 = smul.addr %s144, 4
      %s146 = smul.addr %s145, 4
      %s147 = scalar_lea.vmem %s0, %s146
      %p148 = pneg %p35
      %p149 = pneg %p32
      %p150 = pneg %p56
      %p151 = pneg %p53
      %p152 = pneg %p77
      %p153 = pneg %p74
      %p154 = pneg %p103
      %p155 = pneg %p100
      %p156 = scmp.lt.s32.totalorder %s14, 1
      %s157 = scalar_select %p156, %s14, 1
      %s158 = smul.addr %s157, 4
      %s159 = smul.addr %s158, 8
      %s160 = scalar_lea.vmem %s3, %s159
      %p161 = scmp.lt.s32.totalorder %s14, 1
      %s162 = scalar_select %p161, %s14, 1
      %s163 = smul.addr %s162, 4
      %s164 = smul.addr %s163, 4
      %s165 = scalar_lea.vmem %s0, %s164
      %p166 = scmp.lt.s32.totalorder %s14, 1
      %s167 = scalar_select %p166, %s14, 1
      %s168 = smul.addr %s167, 4
      %s169 = smul.addr %s168, 8
      %s170 = scalar_lea.vmem %s3, %s169
      %v171 = vld [vmem:[%s165] sm:$0xff]
      %v172 = vld [vmem:[%s165 + $0x8] sm:$0x77]
      %v173 = vld [vmem:[%s1] sm:$0xff]
      %v174 = vld [vmem:[%s1 + $0x8] sm:$0xff]
      %v175 = vld [vmem:[%s1 + $0x10] sm:$0xff]
      %v176 = vld [vmem:[%s1 + $0x18] sm:$0xff]
      %v177 = vld [vmem:[%s1 + $0x20] sm:$0xff]
      %v178 = vld [vmem:[%s1 + $0x28] sm:$0xff]
      %v179 = vld [vmem:[%s1 + $0x30] sm:$0xff]
      %v180 = vld [vmem:[%s1 + $0x38] sm:$0xff]
      %v181 = vld [vmem:[%s1 + $0x40] sm:$0xff]
      %v182 = vld [vmem:[%s1 + $0x48] sm:$0xff]
      %v183 = vld [vmem:[%s1 + $0x50] sm:$0xff]
      %v184 = vld [vmem:[%s1 + $0x58] sm:$0xff]
      %v185 = vld [vmem:[%s1 + $0x60] sm:$0xff]
      %v186 = vld [vmem:[%s1 + $0x68] sm:$0xff]
      %v187 = vld [vmem:[%s1 + $0x70] sm:$0xff]
      %v188 = vld [vmem:[%s1 + $0x78] sm:$0xff]
      %v189 = vld [vmem:[%s1 + $0x80] sm:$0xff]
      %v190 = vld [vmem:[%s1 + $0x88] sm:$0xff]
      %v191 = vld [vmem:[%s1 + $0x90] sm:$0xff]
      %v192 = vld [vmem:[%s1 + $0x98] sm:$0xff]
      %v193 = vld [vmem:[%s1 + $0xa0] sm:$0xff]
      %v194 = vld [vmem:[%s1 + $0xa8] sm:$0xff]
      %v195 = vld [vmem:[%s1 + $0xb0] sm:$0xff]
      %v196 = vld [vmem:[%s1 + $0xb8] sm:$0xff]
      %v197 = vld [vmem:[%s1 + $0xc0] sm:$0xff]
      %v198 = vld [vmem:[%s1 + $0xc8] sm:$0xff]
      %v199 = vld [vmem:[%s1 + $0xd0] sm:$0xff]
      %v200 = vld [vmem:[%s1 + $0xd8] sm:$0xff]
      %v201 = vld [vmem:[%s1 + $0xe0] sm:$0xff]
      %v202 = vld [vmem:[%s1 + $0xe8] sm:$0xff]
      %v203 = vld [vmem:[%s1 + $0xf0] sm:$0xff]
      %v204 = vld [vmem:[%s1 + $0xf8] sm:$0xff]
      %v205 = vld [vmem:[%s165 + $0x8] sm:$0xff]
      %s206 = scalar_lea.vmem %s1, 256
      %v207 = vld [vmem:[%s206] sm:$0xff]
      %v208 = vld [vmem:[%s206 + $0x8] sm:$0xff]
      %v209 = vld [vmem:[%s206 + $0x10] sm:$0xff]
      %v210 = vld [vmem:[%s206 + $0x18] sm:$0xff]
      %v211 = vld [vmem:[%s206 + $0x20] sm:$0xff]
      %v212 = vld [vmem:[%s206 + $0x28] sm:$0xff]
      %v213 = vld [vmem:[%s206 + $0x30] sm:$0xff]
      %v214 = vld [vmem:[%s206 + $0x38] sm:$0xff]
      %v215 = vld [vmem:[%s206 + $0x40] sm:$0xff]
      %v216 = vld [vmem:[%s206 + $0x48] sm:$0xff]
      %v217 = vld [vmem:[%s206 + $0x50] sm:$0xff]
      %v218 = vld [vmem:[%s206 + $0x58] sm:$0xff]
      %v219 = vld [vmem:[%s206 + $0x60] sm:$0xff]
      %v220 = vld [vmem:[%s206 + $0x68] sm:$0xff]
      %v221 = vld [vmem:[%s206 + $0x70] sm:$0xff]
      %v222 = vld [vmem:[%s206 + $0x78] sm:$0xff]
      %v223 = vld [vmem:[%s206 + $0x80] sm:$0xff]
      %v224 = vld [vmem:[%s206 + $0x88] sm:$0xff]
      %v225 = vld [vmem:[%s206 + $0x90] sm:$0xff]
      %v226 = vld [vmem:[%s206 + $0x98] sm:$0xff]
      %v227 = vld [vmem:[%s206 + $0xa0] sm:$0xff]
      %v228 = vld [vmem:[%s206 + $0xa8] sm:$0xff]
      %v229 = vld [vmem:[%s206 + $0xb0] sm:$0xff]
      %v230 = vld [vmem:[%s206 + $0xb8] sm:$0xff]
      %v231 = vld [vmem:[%s206 + $0xc0] sm:$0xff]
      %v232 = vld [vmem:[%s206 + $0xc8] sm:$0xff]
      %v233 = vld [vmem:[%s206 + $0xd0] sm:$0xff]
      %v234 = vld [vmem:[%s206 + $0xd8] sm:$0xff]
      %v235 = vld [vmem:[%s206 + $0xe0] sm:$0xff]
      %v236 = vld [vmem:[%s206 + $0xe8] sm:$0xff]
      %v237 = vld [vmem:[%s206 + $0xf0] sm:$0xff]
      %v238 = vld [vmem:[%s206 + $0xf8] sm:$0xff]
      %v241 = vunpack.c.l.b16 %v171
      %v242 = vunpack.c.h.b16 %v171
      %v243 = vunpack.c.l.b16 %v205
      %v244 = vunpack.c.h.b16 %v205
      %v245 = vpack.c.b16 %v243, %v241
      %v246 = vpack.c.b16 %v244, %v242
      %v248 = vshrl.u32 %v245, 16
      %v250 = vshll.u32 %v245, 16
      %v252 = vrot.slane %v250, 1
      %v253 = vor.u32 %v248, %v252
      %v255 = vshrl.u32 %v246, 16
      %v257 = vshll.u32 %v246, 16
      %v259 = vrot.slane %v257, 1
      %v260 = vor.u32 %v255, %v259
      %v295 = vunpack.c.l.b16 %v207
      %v296 = vunpack.c.h.b16 %v207
      %v297 = vunpack.c.l.b16 %v208
      %v298 = vunpack.c.h.b16 %v208
      %v299 = vunpack.c.l.b16 %v209
      %v300 = vunpack.c.h.b16 %v209
      %v301 = vunpack.c.l.b16 %v210
      %v302 = vunpack.c.h.b16 %v210
      %v303 = vunpack.c.l.b16 %v211
      %v304 = vunpack.c.h.b16 %v211
      %v305 = vunpack.c.l.b16 %v212
      %v306 = vunpack.c.h.b16 %v212
      %v307 = vunpack.c.l.b16 %v213
      %v308 = vunpack.c.h.b16 %v213
      %v309 = vunpack.c.l.b16 %v214
      %v310 = vunpack.c.h.b16 %v214
      %v311 = vunpack.c.l.b16 %v215
      %v312 = vunpack.c.h.b16 %v215
      %v313 = vunpack.c.l.b16 %v216
      %v314 = vunpack.c.h.b16 %v216
      %v315 = vunpack.c.l.b16 %v217
      %v316 = vunpack.c.h.b16 %v217
      %v317 = vunpack.c.l.b16 %v218
      %v318 = vunpack.c.h.b16 %v218
      %v319 = vunpack.c.l.b16 %v219
      %v320 = vunpack.c.h.b16 %v219
      %v321 = vunpack.c.l.b16 %v220
      %v322 = vunpack.c.h.b16 %v220
      %v323 = vunpack.c.l.b16 %v221
      %v324 = vunpack.c.h.b16 %v221
      %v325 = vunpack.c.l.b16 %v222
      %v326 = vunpack.c.h.b16 %v222
      %v327 = vunpack.c.l.b16 %v223
      %v328 = vunpack.c.h.b16 %v223
      %v329 = vunpack.c.l.b16 %v224
      %v330 = vunpack.c.h.b16 %v224
      %v331 = vunpack.c.l.b16 %v225
      %v332 = vunpack.c.h.b16 %v225
      %v333 = vunpack.c.l.b16 %v226
      %v334 = vunpack.c.h.b16 %v226
      %v335 = vunpack.c.l.b16 %v227
      %v336 = vunpack.c.h.b16 %v227
      %v337 = vunpack.c.l.b16 %v228
      %v338 = vunpack.c.h.b16 %v228
      %v339 = vunpack.c.l.b16 %v229
      %v340 = vunpack.c.h.b16 %v229
      %v341 = vunpack.c.l.b16 %v230
      %v342 = vunpack.c.h.b16 %v230
      %v343 = vunpack.c.l.b16 %v231
      %v344 = vunpack.c.h.b16 %v231
      %v345 = vunpack.c.l.b16 %v232
      %v346 = vunpack.c.h.b16 %v232
      %v347 = vunpack.c.l.b16 %v233
      %v348 = vunpack.c.h.b16 %v233
      %v349 = vunpack.c.l.b16 %v234
      %v350 = vunpack.c.h.b16 %v234
      %v351 = vunpack.c.l.b16 %v235
      %v352 = vunpack.c.h.b16 %v235
      %v353 = vunpack.c.l.b16 %v236
      %v354 = vunpack.c.h.b16 %v236
      %v355 = vunpack.c.l.b16 %v237
      %v356 = vunpack.c.h.b16 %v237
      %v357 = vunpack.c.l.b16 %v238
      %v358 = vunpack.c.h.b16 %v238
      %v359 = vpack.c.b16 %v297, %v295
      %v360 = vpack.c.b16 %v298, %v296
      %v361 = vpack.c.b16 %v301, %v299
      %v362 = vpack.c.b16 %v302, %v300
      %v363 = vpack.c.b16 %v305, %v303
      %v364 = vpack.c.b16 %v306, %v304
      %v365 = vpack.c.b16 %v309, %v307
      %v366 = vpack.c.b16 %v310, %v308
      %v367 = vpack.c.b16 %v313, %v311
      %v368 = vpack.c.b16 %v314, %v312
      %v369 = vpack.c.b16 %v317, %v315
      %v370 = vpack.c.b16 %v318, %v316
      %v371 = vpack.c.b16 %v321, %v319
      %v372 = vpack.c.b16 %v322, %v320
      %v373 = vpack.c.b16 %v325, %v323
      %v374 = vpack.c.b16 %v326, %v324
      %v375 = vpack.c.b16 %v329, %v327
      %v376 = vpack.c.b16 %v330, %v328
      %v377 = vpack.c.b16 %v333, %v331
      %v378 = vpack.c.b16 %v334, %v332
      %v379 = vpack.c.b16 %v337, %v335
      %v380 = vpack.c.b16 %v338, %v336
      %v381 = vpack.c.b16 %v341, %v339
      %v382 = vpack.c.b16 %v342, %v340
      %v383 = vpack.c.b16 %v345, %v343
      %v384 = vpack.c.b16 %v346, %v344
      %v385 = vpack.c.b16 %v349, %v347
      %v386 = vpack.c.b16 %v350, %v348
      %v387 = vpack.c.b16 %v353, %v351
      %v388 = vpack.c.b16 %v354, %v352
      %v389 = vpack.c.b16 %v357, %v355
      %v390 = vpack.c.b16 %v358, %v356
      %423 = vmatprep.subr.bf16.mxu0 %v360
      %424 = vmatpush1.bf16.msra.mxu0 %v359
      %425 = vmatprep.subr.bf16.mxu0 %v362
      %426 = vmatpush1.bf16.msra.mxu0 %v361
      %427 = vmatprep.subr.bf16.mxu0 %v364
      %428 = vmatpush1.bf16.msra.mxu0 %v363
      %429 = vmatprep.subr.bf16.mxu0 %v366
      %430 = vmatpush1.bf16.msra.mxu0 %v365
      %431 = vmatprep.subr.bf16.mxu0 %v368
      %432 = vmatpush1.bf16.msra.mxu0 %v367
      %433 = vmatprep.subr.bf16.mxu0 %v370
      %434 = vmatpush1.bf16.msra.mxu0 %v369
      %435 = vmatprep.subr.bf16.mxu0 %v372
      %436 = vmatpush1.bf16.msra.mxu0 %v371
      %437 = vmatprep.subr.bf16.mxu0 %v374
      %438 = vmatpush1.bf16.msra.mxu0 %v373
      %439 = vmatprep.subr.bf16.mxu0 %v376
      %440 = vmatpush1.bf16.msra.mxu0 %v375
      %441 = vmatprep.subr.bf16.mxu0 %v378
      %442 = vmatpush1.bf16.msra.mxu0 %v377
      %443 = vmatprep.subr.bf16.mxu0 %v380
      %444 = vmatpush1.bf16.msra.mxu0 %v379
      %445 = vmatprep.subr.bf16.mxu0 %v382
      %446 = vmatpush1.bf16.msra.mxu0 %v381
      %447 = vmatprep.subr.bf16.mxu0 %v384
      %448 = vmatpush1.bf16.msra.mxu0 %v383
      %449 = vmatprep.subr.bf16.mxu0 %v386
      %450 = vmatpush1.bf16.msra.mxu0 %v385
      %451 = vmatprep.subr.bf16.mxu0 %v388
      %452 = vmatpush1.bf16.msra.mxu0 %v387
      %453 = vmatprep.subr.bf16.mxu0 %v390
      %454 = vmatpush1.bf16.msra.mxu0 %v389
      %455 = vmatprep.mubr.bf16.mxu0 %v260
      %456 = vmatmul.mubr.bf16.gmra.mrb[0].mxu0 %v253
      %v457 = vpop.f32.mrb[0].mxu0
      %v458 = vadd.f32 0.0, %v457
      %v459 = vpop.f32.mrb[0].mxu0
      %v460 = vadd.f32 0.0, %v459
      %v461 = vpop.f32.mrb[0].mxu0
      %v462 = vadd.f32 0.0, %v461
      %v463 = vpop.f32.mrb[0].mxu0
      %v464 = vadd.f32 0.0, %v463
      %465 = vdwg.mxu0
      %v467 = vunpack.c.l.b16 %v172
      %v468 = vunpack.c.h.b16 %v172
      %v469 = vpack.c.b16 %v467, %v241
      %v470 = vpack.c.b16 %v468, %v242
      %v505 = vunpack.c.l.b16 %v173
      %v506 = vunpack.c.h.b16 %v173
      %v507 = vunpack.c.l.b16 %v174
      %v508 = vunpack.c.h.b16 %v174
      %v509 = vunpack.c.l.b16 %v175
      %v510 = vunpack.c.h.b16 %v175
      %v511 = vunpack.c.l.b16 %v176
      %v512 = vunpack.c.h.b16 %v176
      %v513 = vunpack.c.l.b16 %v177
      %v514 = vunpack.c.h.b16 %v177
      %v515 = vunpack.c.l.b16 %v178
      %v516 = vunpack.c.h.b16 %v178
      %v517 = vunpack.c.l.b16 %v179
      %v518 = vunpack.c.h.b16 %v179
      %v519 = vunpack.c.l.b16 %v180
      %v520 = vunpack.c.h.b16 %v180
      %v521 = vunpack.c.l.b16 %v181
      %v522 = vunpack.c.h.b16 %v181
      %v523 = vunpack.c.l.b16 %v182
      %v524 = vunpack.c.h.b16 %v182
      %v525 = vunpack.c.l.b16 %v183
      %v526 = vunpack.c.h.b16 %v183
      %v527 = vunpack.c.l.b16 %v184
      %v528 = vunpack.c.h.b16 %v184
      %v529 = vunpack.c.l.b16 %v185
      %v530 = vunpack.c.h.b16 %v185
      %v531 = vunpack.c.l.b16 %v186
      %v532 = vunpack.c.h.b16 %v186
      %v533 = vunpack.c.l.b16 %v187
      %v534 = vunpack.c.h.b16 %v187
      %v535 = vunpack.c.l.b16 %v188
      %v536 = vunpack.c.h.b16 %v188
      %v537 = vunpack.c.l.b16 %v189
      %v538 = vunpack.c.h.b16 %v189
      %v539 = vunpack.c.l.b16 %v190
      %v540 = vunpack.c.h.b16 %v190
      %v541 = vunpack.c.l.b16 %v191
      %v542 = vunpack.c.h.b16 %v191
      %v543 = vunpack.c.l.b16 %v192
      %v544 = vunpack.c.h.b16 %v192
      %v545 = vunpack.c.l.b16 %v193
      %v546 = vunpack.c.h.b16 %v193
      %v547 = vunpack.c.l.b16 %v194
      %v548 = vunpack.c.h.b16 %v194
      %v549 = vunpack.c.l.b16 %v195
      %v550 = vunpack.c.h.b16 %v195
      %v551 = vunpack.c.l.b16 %v196
      %v552 = vunpack.c.h.b16 %v196
      %v553 = vunpack.c.l.b16 %v197
      %v554 = vunpack.c.h.b16 %v197
      %v555 = vunpack.c.l.b16 %v198
      %v556 = vunpack.c.h.b16 %v198
      %v557 = vunpack.c.l.b16 %v199
      %v558 = vunpack.c.h.b16 %v199
      %v559 = vunpack.c.l.b16 %v200
      %v560 = vunpack.c.h.b16 %v200
      %v561 = vunpack.c.l.b16 %v201
      %v562 = vunpack.c.h.b16 %v201
      %v563 = vunpack.c.l.b16 %v202
      %v564 = vunpack.c.h.b16 %v202
      %v565 = vunpack.c.l.b16 %v203
      %v566 = vunpack.c.h.b16 %v203
      %v567 = vunpack.c.l.b16 %v204
      %v568 = vunpack.c.h.b16 %v204
      %v569 = vpack.c.b16 %v507, %v505
      %v570 = vpack.c.b16 %v508, %v506
      %v571 = vpack.c.b16 %v511, %v509
      %v572 = vpack.c.b16 %v512, %v510
      %v573 = vpack.c.b16 %v515, %v513
      %v574 = vpack.c.b16 %v516, %v514
      %v575 = vpack.c.b16 %v519, %v517
      %v576 = vpack.c.b16 %v520, %v518
      %v577 = vpack.c.b16 %v523, %v521
      %v578 = vpack.c.b16 %v524, %v522
      %v579 = vpack.c.b16 %v527, %v525
      %v580 = vpack.c.b16 %v528, %v526
      %v581 = vpack.c.b16 %v531, %v529
      %v582 = vpack.c.b16 %v532, %v530
      %v583 = vpack.c.b16 %v535, %v533
      %v584 = vpack.c.b16 %v536, %v534
      %v585 = vpack.c.b16 %v539, %v537
      %v586 = vpack.c.b16 %v540, %v538
      %v587 = vpack.c.b16 %v543, %v541
      %v588 = vpack.c.b16 %v544, %v542
      %v589 = vpack.c.b16 %v547, %v545
      %v590 = vpack.c.b16 %v548, %v546
      %v591 = vpack.c.b16 %v551, %v549
      %v592 = vpack.c.b16 %v552, %v550
      %v593 = vpack.c.b16 %v555, %v553
      %v594 = vpack.c.b16 %v556, %v554
      %v595 = vpack.c.b16 %v559, %v557
      %v596 = vpack.c.b16 %v560, %v558
      %v597 = vpack.c.b16 %v563, %v561
      %v598 = vpack.c.b16 %v564, %v562
      %v599 = vpack.c.b16 %v567, %v565
      %v600 = vpack.c.b16 %v568, %v566
      %633 = vmatprep.subr.bf16.mxu0 %v570
      %634 = vmatpush1.bf16.msra.mxu0 %v569
      %635 = vmatprep.subr.bf16.mxu0 %v572
      %636 = vmatpush1.bf16.msra.mxu0 %v571
      %637 = vmatprep.subr.bf16.mxu0 %v574
      %638 = vmatpush1.bf16.msra.mxu0 %v573
      %639 = vmatprep.subr.bf16.mxu0 %v576
      %640 = vmatpush1.bf16.msra.mxu0 %v575
      %641 = vmatprep.subr.bf16.mxu0 %v578
      %642 = vmatpush1.bf16.msra.mxu0 %v577
      %643 = vmatprep.subr.bf16.mxu0 %v580
      %644 = vmatpush1.bf16.msra.mxu0 %v579
      %645 = vmatprep.subr.bf16.mxu0 %v582
      %646 = vmatpush1.bf16.msra.mxu0 %v581
      %647 = vmatprep.subr.bf16.mxu0 %v584
      %648 = vmatpush1.bf16.msra.mxu0 %v583
      %649 = vmatprep.subr.bf16.mxu0 %v586
      %650 = vmatpush1.bf16.msra.mxu0 %v585
      %651 = vmatprep.subr.bf16.mxu0 %v588
      %652 = vmatpush1.bf16.msra.mxu0 %v587
      %653 = vmatprep.subr.bf16.mxu0 %v590
      %654 = vmatpush1.bf16.msra.mxu0 %v589
      %655 = vmatprep.subr.bf16.mxu0 %v592
      %656 = vmatpush1.bf16.msra.mxu0 %v591
      %657 = vmatprep.subr.bf16.mxu0 %v594
      %658 = vmatpush1.bf16.msra.mxu0 %v593
      %659 = vmatprep.subr.bf16.mxu0 %v596
      %660 = vmatpush1.bf16.msra.mxu0 %v595
      %661 = vmatprep.subr.bf16.mxu0 %v598
      %662 = vmatpush1.bf16.msra.mxu0 %v597
      %663 = vmatprep.subr.bf16.mxu0 %v600
      %664 = vmatpush1.bf16.msra.mxu0 %v599
      %665 = vmatprep.mubr.bf16.mxu0 %v470
      %666 = vmatmul.mubr.bf16.gmra.mrb[0].mxu0 %v469
      %v667 = vpop.f32.mrb[0].mxu0
      %v668 = vadd.f32 %v458, %v667
      %v669 = vpop.f32.mrb[0].mxu0
      %v670 = vadd.f32 %v460, %v669
      %v671 = vpop.f32.mrb[0].mxu0
      %v672 = vadd.f32 %v462, %v671
      %v673 = vpop.f32.mrb[0].mxu0
      %v674 = vadd.f32 %v464, %v673
      %675 = vdwg.mxu0
      %v676 = vld [vmem:[%s165] sm:$0xee]
      %s677 = scalar_lea.vmem %s1, 512
      %v678 = vld [vmem:[%s677] sm:$0xff]
      %v679 = vld [vmem:[%s677 + $0x8] sm:$0xff]
      %v680 = vld [vmem:[%s677 + $0x10] sm:$0xff]
      %v681 = vld [vmem:[%s677 + $0x18] sm:$0xff]
      %v682 = vld [vmem:[%s677 + $0x20] sm:$0xff]
      %v683 = vld [vmem:[%s677 + $0x28] sm:$0xff]
      %v684 = vld [vmem:[%s677 + $0x30] sm:$0xff]
      %v685 = vld [vmem:[%s677 + $0x38] sm:$0xff]
      %v686 = vld [vmem:[%s677 + $0x40] sm:$0xff]
      %v687 = vld [vmem:[%s677 + $0x48] sm:$0xff]
      %v688 = vld [vmem:[%s677 + $0x50] sm:$0xff]
      %v689 = vld [vmem:[%s677 + $0x58] sm:$0xff]
      %v690 = vld [vmem:[%s677 + $0x60] sm:$0xff]
      %v691 = vld [vmem:[%s677 + $0x68] sm:$0xff]
      %v692 = vld [vmem:[%s677 + $0x70] sm:$0xff]
      %v693 = vld [vmem:[%s677 + $0x78] sm:$0xff]
      %v694 = vld [vmem:[%s677 + $0x80] sm:$0xff]
      %v695 = vld [vmem:[%s677 + $0x88] sm:$0xff]
      %v696 = vld [vmem:[%s677 + $0x90] sm:$0xff]
      %v697 = vld [vmem:[%s677 + $0x98] sm:$0xff]
      %v698 = vld [vmem:[%s677 + $0xa0] sm:$0xff]
      %v699 = vld [vmem:[%s677 + $0xa8] sm:$0xff]
      %v700 = vld [vmem:[%s677 + $0xb0] sm:$0xff]
      %v701 = vld [vmem:[%s677 + $0xb8] sm:$0xff]
      %v702 = vld [vmem:[%s677 + $0xc0] sm:$0xff]
      %v703 = vld [vmem:[%s677 + $0xc8] sm:$0xff]
      %v704 = vld [vmem:[%s677 + $0xd0] sm:$0xff]
      %v705 = vld [vmem:[%s677 + $0xd8] sm:$0xff]
      %v706 = vld [vmem:[%s677 + $0xe0] sm:$0xff]
      %v707 = vld [vmem:[%s677 + $0xe8] sm:$0xff]
      %v708 = vld [vmem:[%s677 + $0xf0] sm:$0xff]
      %v709 = vld [vmem:[%s677 + $0xf8] sm:$0xff]
      %v711 = vunpack.c.l.b16 %v676
      %v712 = vunpack.c.h.b16 %v676
      %v713 = vpack.c.b16 %v243, %v711
      %v714 = vpack.c.b16 %v244, %v712
      %v715 = vrot.slane %v713, 1
      %v716 = vrot.slane %v714, 1
      %v751 = vunpack.c.l.b16 %v678
      %v752 = vunpack.c.h.b16 %v678
      %v753 = vunpack.c.l.b16 %v679
      %v754 = vunpack.c.h.b16 %v679
      %v755 = vunpack.c.l.b16 %v680
      %v756 = vunpack.c.h.b16 %v680
      %v757 = vunpack.c.l.b16 %v681
      %v758 = vunpack.c.h.b16 %v681
      %v759 = vunpack.c.l.b16 %v682
      %v760 = vunpack.c.h.b16 %v682
      %v761 = vunpack.c.l.b16 %v683
      %v762 = vunpack.c.h.b16 %v683
      %v763 = vunpack.c.l.b16 %v684
      %v764 = vunpack.c.h.b16 %v684
      %v765 = vunpack.c.l.b16 %v685
      %v766 = vunpack.c.h.b16 %v685
      %v767 = vunpack.c.l.b16 %v686
      %v768 = vunpack.c.h.b16 %v686
      %v769 = vunpack.c.l.b16 %v687
      %v770 = vunpack.c.h.b16 %v687
      %v771 = vunpack.c.l.b16 %v688
      %v772 = vunpack.c.h.b16 %v688
      %v773 = vunpack.c.l.b16 %v689
      %v774 = vunpack.c.h.b16 %v689
      %v775 = vunpack.c.l.b16 %v690
      %v776 = vunpack.c.h.b16 %v690
      %v777 = vunpack.c.l.b16 %v691
      %v778 = vunpack.c.h.b16 %v691
      %v779 = vunpack.c.l.b16 %v692
      %v780 = vunpack.c.h.b16 %v692
      %v781 = vunpack.c.l.b16 %v693
      %v782 = vunpack.c.h.b16 %v693
      %v783 = vunpack.c.l.b16 %v694
      %v784 = vunpack.c.h.b16 %v694
      %v785 = vunpack.c.l.b16 %v695
      %v786 = vunpack.c.h.b16 %v695
      %v787 = vunpack.c.l.b16 %v696
      %v788 = vunpack.c.h.b16 %v696
      %v789 = vunpack.c.l.b16 %v697
      %v790 = vunpack.c.h.b16 %v697
      %v791 = vunpack.c.l.b16 %v698
      %v792 = vunpack.c.h.b16 %v698
      %v793 = vunpack.c.l.b16 %v699
      %v794 = vunpack.c.h.b16 %v699
      %v795 = vunpack.c.l.b16 %v700
      %v796 = vunpack.c.h.b16 %v700
      %v797 = vunpack.c.l.b16 %v701
      %v798 = vunpack.c.h.b16 %v701
      %v799 = vunpack.c.l.b16 %v702
      %v800 = vunpack.c.h.b16 %v702
      %v801 = vunpack.c.l.b16 %v703
      %v802 = vunpack.c.h.b16 %v703
      %v803 = vunpack.c.l.b16 %v704
      %v804 = vunpack.c.h.b16 %v704
      %v805 = vunpack.c.l.b16 %v705
      %v806 = vunpack.c.h.b16 %v705
      %v807 = vunpack.c.l.b16 %v706
      %v808 = vunpack.c.h.b16 %v706
      %v809 = vunpack.c.l.b16 %v707
      %v810 = vunpack.c.h.b16 %v707
      %v811 = vunpack.c.l.b16 %v708
      %v812 = vunpack.c.h.b16 %v708
      %v813 = vunpack.c.l.b16 %v709
      %v814 = vunpack.c.h.b16 %v709
      %v815 = vpack.c.b16 %v753, %v751
      %v816 = vpack.c.b16 %v754, %v752
      %v817 = vpack.c.b16 %v757, %v755
      %v818 = vpack.c.b16 %v758, %v756
      %v819 = vpack.c.b16 %v761, %v759
      %v820 = vpack.c.b16 %v762, %v760
      %v821 = vpack.c.b16 %v765, %v763
      %v822 = vpack.c.b16 %v766, %v764
      %v823 = vpack.c.b16 %v769, %v767
      %v824 = vpack.c.b16 %v770, %v768
      %v825 = vpack.c.b16 %v773, %v771
      %v826 = vpack.c.b16 %v774, %v772
      %v827 = vpack.c.b16 %v777, %v775
      %v828 = vpack.c.b16 %v778, %v776
      %v829 = vpack.c.b16 %v781, %v779
      %v830 = vpack.c.b16 %v782, %v780
      %v831 = vpack.c.b16 %v785, %v783
      %v832 = vpack.c.b16 %v786, %v784
      %v833 = vpack.c.b16 %v789, %v787
      %v834 = vpack.c.b16 %v790, %v788
      %v835 = vpack.c.b16 %v793, %v791
      %v836 = vpack.c.b16 %v794, %v792
      %v837 = vpack.c.b16 %v797, %v795
      %v838 = vpack.c.b16 %v798, %v796
      %v839 = vpack.c.b16 %v801, %v799
      %v840 = vpack.c.b16 %v802, %v800
      %v841 = vpack.c.b16 %v805, %v803
      %v842 = vpack.c.b16 %v806, %v804
      %v843 = vpack.c.b16 %v809, %v807
      %v844 = vpack.c.b16 %v810, %v808
      %v845 = vpack.c.b16 %v813, %v811
      %v846 = vpack.c.b16 %v814, %v812
      %879 = vmatprep.subr.bf16.mxu0 %v816
      %880 = vmatpush1.bf16.msra.mxu0 %v815
      %881 = vmatprep.subr.bf16.mxu0 %v818
      %882 = vmatpush1.bf16.msra.mxu0 %v817
      %883 = vmatprep.subr.bf16.mxu0 %v820
      %884 = vmatpush1.bf16.msra.mxu0 %v819
      %885 = vmatprep.subr.bf16.mxu0 %v822
      %886 = vmatpush1.bf16.msra.mxu0 %v821
      %887 = vmatprep.subr.bf16.mxu0 %v824
      %888 = vmatpush1.bf16.msra.mxu0 %v823
      %889 = vmatprep.subr.bf16.mxu0 %v826
      %890 = vmatpush1.bf16.msra.mxu0 %v825
      %891 = vmatprep.subr.bf16.mxu0 %v828
      %892 = vmatpush1.bf16.msra.mxu0 %v827
      %893 = vmatprep.subr.bf16.mxu0 %v830
      %894 = vmatpush1.bf16.msra.mxu0 %v829
      %895 = vmatprep.subr.bf16.mxu0 %v832
      %896 = vmatpush1.bf16.msra.mxu0 %v831
      %897 = vmatprep.subr.bf16.mxu0 %v834
      %898 = vmatpush1.bf16.msra.mxu0 %v833
      %899 = vmatprep.subr.bf16.mxu0 %v836
      %900 = vmatpush1.bf16.msra.mxu0 %v835
      %901 = vmatprep.subr.bf16.mxu0 %v838
      %902 = vmatpush1.bf16.msra.mxu0 %v837
      %903 = vmatprep.subr.bf16.mxu0 %v840
      %904 = vmatpush1.bf16.msra.mxu0 %v839
      %905 = vmatprep.subr.bf16.mxu0 %v842
      %906 = vmatpush1.bf16.msra.mxu0 %v841
      %907 = vmatprep.subr.bf16.mxu0 %v844
      %908 = vmatpush1.bf16.msra.mxu0 %v843
      %909 = vmatprep.subr.bf16.mxu0 %v846
      %910 = vmatpush1.bf16.msra.mxu0 %v845
      %911 = vmatprep.mubr.bf16.mxu0 %v716
      %912 = vmatmul.mubr.bf16.gmra.mrb[0].mxu0 %v715
      %v913 = vpop.f32.mrb[0].mxu0
      %v914 = vadd.f32 0.0, %v913
      %v915 = vpop.f32.mrb[0].mxu0
      %v916 = vadd.f32 0.0, %v915
      %v917 = vpop.f32.mrb[0].mxu0
      %v918 = vadd.f32 0.0, %v917
      %v919 = vpop.f32.mrb[0].mxu0
      %v920 = vadd.f32 0.0, %v919
      %921 = vdwg.mxu0
      %v922 = vadd.f32 %v668, %v914
      %v923 = vadd.f32 %v670, %v916
      %v924 = vadd.f32 %v672, %v918
      %v925 = vadd.f32 %v674, %v920
      %v926 = vld [vmem:[%s2] sm:$0x3]
      %v928 = vlaneseq
      %v929 = vshrl.u32 %v928, 7
      %v930 = vsub.s32 0, %v929
      %v931 = vrot.slane %v926, %v930
      %v932 = vlaneseq
      %v933 = vshrl.u32 %v932, 7
      %v934 = vsub.s32 1, %v933
      %v935 = vrot.slane %v926, %v934
      %v938 = vadd.f32 %v922, %v931
      %v939 = vadd.f32 %v923, %v935
      %v940 = vadd.f32 %v924, %v931
      %v941 = vadd.f32 %v925, %v935
      %v942 = vtanh.pop %v938
      %v943 = vtanh.pop %v939
      %v944 = vtanh.pop %v940
      %v945 = vtanh.pop %v941
      %946 = vst [vmem:[%s170] sm:$0xff] %v942
      %vm947 = vcmask 785408
      %948 = vst.msk [vmem:[%s170 + $0x8] sm:$0xff] %vm947, %v943
      %949 = vst [vmem:[%s170 + $0x10] sm:$0x3f] %v944
      %vm950 = vcmask 783360
      %951 = vst.msk [vmem:[%s170 + $0x18] sm:$0x3f] %vm950, %v945
      %p952 = scmp.lt.s32.totalorder %s14, 1
      %s953 = scalar_select %p952, %s14, 1
      %s954 = smul.addr %s953, 4
      %s955 = smul.addr %s954, 8
      %s956 = scalar_lea.vmem %s3, %s955
      // Predicated region
      $region33: #{conv_tanh_nchw.1} parent=31 // pred_check
        %p957 = pneg %p100
      $region34: #{conv_tanh_nchw.1} parent=31 // pred_check_branch
        %959 = sbr.rel (%p957) target = $region36
      $region35: #{conv_tanh_nchw.1} parent=31 // pred_region
        _
      $region36: #{conv_tanh_nchw.1} parent=31 // pred_fallthru
        _
    $region32: #{conv_tanh_nchw.1} parent=5 // pred_fallthru
      _
    %p960 = scmp.le.s32.totalorder 2, %s9
    // Predicated region
    $region37: #{conv_tanh_nchw.1} parent=5 // pred_check
      %p961 = pneg %p960
    $region38: #{conv_tanh_nchw.1} parent=5 // pred_check_branch
      %963 = sbr.rel (%p961) target = $region40
    $region39: #{conv_tanh_nchw.1} parent=5 // pred_region
      %s964 = ssub.s32 %s9, 2
      // Predicated region
      $region41: #{conv_tanh_nchw.1} parent=39 // pred_check
        %p965 = pneg %p106
      $region42: #{conv_tanh_nchw.1} parent=39 // pred_check_branch
        %967 = sbr.rel (%p965) target = $region44
      $region43: #{conv_tanh_nchw.1} parent=39 // pred_region
        %p968 = scmp.lt.s32.totalorder %s15, 1
        %s969 = scalar_select %p968, %s15, 1
        %s970 = smul.addr %s969, 4
        %s971 = smul.addr %s970, 8
        %s972 = scalar_lea.vmem %s3, %s971
      $region44: #{conv_tanh_nchw.1} parent=39 // pred_fallthru
        _
    $region40: #{conv_tanh_nchw.1} parent=5 // pred_fallthru
      _
  $region6: #{conv_tanh_nchw.1} parent=0 // loop_footer
    %s13 = sadd.s32 1, %s9
  $region7: #{conv_tanh_nchw.1} parent=0 // loop_footer_branch
    %8 = sbr.rel target = $region3
  $region8: #{conv_tanh_nchw.1} parent=0 // loop_exit
    _

</llo_original>
